<compile_context>
chip_gen: v5e
topology: v5e:2x2
jax: 0.10.0
libtpu: 0.0.40
codegen_flags: <defaults>
</compile_context>

<pallas_src>
import jax
import jax.numpy as jnp
from jax import lax
from jax.experimental import pallas as pl
from jax.experimental.pallas import tpu as pltpu

KERNEL_SIZE = 4
STRIDE = 2
PADDING = 1
EPS = 1e-5
NEG_SLOPE = 0.2


def _downsample_kernel(s_ref, w_ref, o_ref):
    """Per-batch-element fused conv(4x4, s=2, p=1) + InstanceNorm + LeakyReLU.

    s_ref: (1, Hc, Wc, 4*Cin)  bf16  space-to-depth(2) of the padded NHWC input
    w_ref: (4, 4*Cin, Cout)    bf16  one [4*Cin, Cout] matrix per cell offset
    o_ref: (1, Ho*Wo, Cout)    f32   flattened-spatial NHWC output
    """
    Hc, Wc, K = s_ref.shape[1], s_ref.shape[2], s_ref.shape[3]
    HW, Cout = o_ref.shape[1], o_ref.shape[2]
    Ho, Wo = Hc - 1, Wc - 1

    # Conv as 4 shifted matmuls on the MXU (bf16 operands, f32 accumulation).
    acc = jnp.zeros((HW, Cout), jnp.float32)
    for t, (dy, dx) in enumerate(((0, 0), (0, 1), (1, 0), (1, 1))):
        tap = s_ref[0, dy:dy + Ho, dx:dx + Wo, :]           # [Ho, Wo, K] bf16
        tap = tap.reshape(HW, K)
        acc = acc + jnp.dot(tap, w_ref[t],
                            preferred_element_type=jnp.float32)

    # InstanceNorm2d (affine=False): per-(instance, channel) stats over HW,
    # single pass (sum + sum-of-squares), biased variance, eps=1e-5.
    inv_hw = 1.0 / float(HW)
    mean = jnp.sum(acc, axis=0, keepdims=True) * inv_hw            # [1, Cout]
    ex2 = jnp.sum(acc * acc, axis=0, keepdims=True) * inv_hw       # [1, Cout]
    var = ex2 - mean * mean
    y = (acc - mean) * lax.rsqrt(var + EPS)

    # LeakyReLU(0.2)
    o_ref[0] = jnp.where(y > 0, y, NEG_SLOPE * y).astype(o_ref.dtype)


def downsample_pallas(x_nchw, weight, bias=None):
    """Fused Downsample forward (default module config).

    x_nchw: [N, Cin, H, W] f32, weight: [Cout, Cin, 4, 4], bias: [Cout] or None.
    `bias` is accepted for API parity but UNUSED: a per-channel constant is
    exactly cancelled by InstanceNorm2d(affine=False).

    Returns NHWC output [N, Ho, Wo, Cout] (f32); transpose at the consumer only
    if NCHW is required (keeps the memory-bound hot path free of a round trip).
    """
    del bias  # provably cancelled by the instance norm
    N, Cin, H, W = x_nchw.shape
    Cout = weight.shape[0]
    assert weight.shape == (Cout, Cin, KERNEL_SIZE, KERNEL_SIZE)
    assert H % 2 == 0 and W % 2 == 0, "stride-2 downsample expects even H, W"
    Ho = (H - KERNEL_SIZE + 2 * PADDING) // STRIDE + 1
    Wo = (W - KERNEL_SIZE + 2 * PADDING) // STRIDE + 1
    HW = Ho * Wo
    Hc, Wc = (H + 2 * PADDING) // 2, (W + 2 * PADDING) // 2   # = Ho + 1, Wo + 1
    K = 4 * Cin

    # ---- layout-only glue (1x data, NO im2col expansion) -------------------
    # NCHW -> NHWC, pad spatially by 1, space-to-depth factor 2:
    #   s2d[n, i, j, (r*2 + c)*Cin + ci] = xpad[n, 2i + r, 2j + c, ci]
    x_nhwc = jnp.transpose(x_nchw, (0, 2, 3, 1))
    xp = jnp.pad(x_nhwc, ((0, 0), (PADDING, PADDING), (PADDING, PADDING), (0, 0)))
    s2d = (xp.reshape(N, Hc, 2, Wc, 2, Cin)
             .transpose(0, 1, 3, 2, 4, 5)
             .reshape(N, Hc, Wc, K)
             .astype(jnp.bfloat16))

    # Weights -> one matrix per 2x2 cell offset, matching the s2d channel order:
    #   w4[dy*2 + dx, (r*2 + c)*Cin + ci, co] = weight[co, ci, 2*dy + r, 2*dx + c]
    w4 = (weight.astype(jnp.float32)
                .reshape(Cout, Cin, 2, 2, 2, 2)
                .transpose(2, 4, 3, 5, 1, 0)          # [dy, dx, r, c, Cin, Cout]
                .reshape(4, K, Cout)
                .astype(jnp.bfloat16))

    out = pl.pallas_call(
        _downsample_kernel,
        out_shape=jax.ShapeDtypeStruct((N, HW, Cout), jnp.float32),
        grid_spec=pltpu.PrefetchScalarGridSpec(
            num_scalar_prefetch=0,
            grid=(N,),
            in_specs=[
                pl.BlockSpec((1, Hc, Wc, K), lambda i: (i, 0, 0, 0)),
                # Constant index map -> weights fetched once, stay resident.
                pl.BlockSpec((4, K, Cout), lambda i: (0, 0, 0)),
            ],
            out_specs=pl.BlockSpec((1, HW, Cout), lambda i: (i, 0, 0)),
        ),
        compiler_params=pltpu.CompilerParams(
            dimension_semantics=("parallel",)),
    )(s2d, w4)

    # Free reshape (metadata only) to NHWC.
    return out.reshape(N, Ho, Wo, Cout)


def downsample_ref(x_nchw, weight, bias):
    """Pure-JAX reference (conv + bias + instance norm + leaky relu), f32."""
    y = lax.conv_general_dilated(
        x_nchw.astype(jnp.float32), weight.astype(jnp.float32),
        window_strides=(STRIDE, STRIDE),
        padding=((PADDING, PADDING), (PADDING, PADDING)),
        dimension_numbers=("NCHW", "OIHW", "NCHW"),
        precision=lax.Precision.HIGHEST)
    y = y + bias.reshape(1, -1, 1, 1)
    mean = jnp.mean(y, axis=(2, 3), keepdims=True)
    var = jnp.mean((y - mean) ** 2, axis=(2, 3), keepdims=True)
    y = (y - mean) * lax.rsqrt(var + EPS)
    return jnp.where(y > 0, y, NEG_SLOPE * y)


if __name__ == "__main__":
    key = jax.random.PRNGKey(0)
    kx, kw, kb = jax.random.split(key, 3)

    N, Cin, H, W = 2, 4, 16, 16
    Cout = 8

    x = jax.random.normal(kx, (N, Cin, H, W), dtype=jnp.float32)
    weight = 0.1 * jax.random.normal(kw, (Cout, Cin, KERNEL_SIZE, KERNEL_SIZE),
                                     dtype=jnp.float32)
    bias = 0.1 * jax.random.normal(kb, (Cout,), dtype=jnp.float32)

    out_nhwc = downsample_pallas(x, weight, bias)
    out_nhwc = jax.block_until_ready(out_nhwc)
    assert out_nhwc.shape == (N, H // 2, W // 2, Cout), out_nhwc.shape

    # NCHW only for comparison against the PyTorch-convention reference.
    out_nchw = jnp.transpose(out_nhwc, (0, 3, 1, 2))

    # Precision-matched reference: same bf16 quantization of the matmul operands
    # (also proves the dropped bias is a no-op, since the ref still adds it).
    xq = x.astype(jnp.bfloat16).astype(jnp.float32)
    wq = weight.astype(jnp.bfloat16).astype(jnp.float32)
    ref_matched = downsample_ref(xq, wq, bias)
    err_m = float(jnp.max(jnp.abs(out_nchw - ref_matched)))
    assert jnp.allclose(out_nchw, ref_matched, atol=3e-3, rtol=3e-3), err_m

    # Full-f32 module semantics (bf16 operand quantization is the only delta).
    ref_f32 = downsample_ref(x, weight, bias)
    err_f = float(jnp.max(jnp.abs(out_nchw - ref_f32)))
    assert jnp.allclose(out_nchw, ref_f32, atol=1e-1, rtol=1e-1), err_f

    print("KERNEL_OK")
</pallas_src>

<mosaic_0001>
module attributes {stable_mosaic.version = 11 : i64} {
  func.func @_downsample_kernel(%arg0: i32, %arg1: memref<1x9x9x16xbf16, #tpu.memory_space<vmem>>, %arg2: memref<4x16x8xbf16, #tpu.memory_space<vmem>>, %arg3: memref<1x64x8xf32, #tpu.memory_space<vmem>>) attributes {dimension_semantics = [#tpu.dimension_semantics<parallel>], iteration_bounds = array<i64: 2>, scalar_prefetch = 0 : i64, scratch_operands = 0 : i64, tpu.core_type = #tpu.core_type<tc>, window_params = [{transform_indices = @transform_0, window_bounds = array<i64: 1, 9, 9, 16>}, {pipeline_mode = #tpu.pipeline_mode<synchronous>, transform_indices = @transform_1, window_bounds = array<i64: 4, 16, 8>}, {transform_indices = @transform_2, window_bounds = array<i64: 1, 64, 8>}]} {
    %cst = arith.constant 0.000000e+00 : f32
    %0 = vector.broadcast %cst : f32 to vector<64x8xf32>
    %c0 = arith.constant 0 : index
    %c0_0 = arith.constant 0 : index
    %c0_1 = arith.constant 0 : index
    %c0_2 = arith.constant 0 : index
    %1 = vector.load %arg1[%c0, %c0_0, %c0_1, %c0_2] : memref<1x9x9x16xbf16, #tpu.memory_space<vmem>>, vector<1x8x8x16xbf16>
    %2 = vector.shape_cast %1 : vector<1x8x8x16xbf16> to vector<8x8x16xbf16>
    %3 = vector.shape_cast %2 : vector<8x8x16xbf16> to vector<64x16xbf16>
    %c0_3 = arith.constant 0 : index
    %c0_4 = arith.constant 0 : index
    %c0_5 = arith.constant 0 : index
    %4 = vector.load %arg2[%c0_3, %c0_4, %c0_5] : memref<4x16x8xbf16, #tpu.memory_space<vmem>>, vector<1x16x8xbf16>
    %5 = vector.shape_cast %4 : vector<1x16x8xbf16> to vector<16x8xbf16>
    %cst_6 = arith.constant dense<0.000000e+00> : vector<64x8xf32>
    %6 = tpu.matmul %3, %5, %cst_6 {dimension_numbers = #tpu.dot_dimension_numbers<[1], [0], [0], [1], [0, 0, 1, 1], [], []>} : vector<64x16xbf16>, vector<16x8xbf16>, vector<64x8xf32> -> vector<64x8xf32>
    %7 = arith.addf %0, %6 : vector<64x8xf32>
    %c0_7 = arith.constant 0 : index
    %c0_8 = arith.constant 0 : index
    %c1 = arith.constant 1 : index
    %c0_9 = arith.constant 0 : index
    %8 = vector.load %arg1[%c0_7, %c0_8, %c1, %c0_9] : memref<1x9x9x16xbf16, #tpu.memory_space<vmem>>, vector<1x8x8x16xbf16>
    %9 = vector.shape_cast %8 : vector<1x8x8x16xbf16> to vector<8x8x16xbf16>
    %10 = vector.shape_cast %9 : vector<8x8x16xbf16> to vector<64x16xbf16>
    %c1_10 = arith.constant 1 : index
    %c0_11 = arith.constant 0 : index
    %c0_12 = arith.constant 0 : index
    %11 = vector.load %arg2[%c1_10, %c0_11, %c0_12] : memref<4x16x8xbf16, #tpu.memory_space<vmem>>, vector<1x16x8xbf16>
    %12 = vector.shape_cast %11 : vector<1x16x8xbf16> to vector<16x8xbf16>
    %cst_13 = arith.constant dense<0.000000e+00> : vector<64x8xf32>
    %13 = tpu.matmul %10, %12, %cst_13 {dimension_numbers = #tpu.dot_dimension_numbers<[1], [0], [0], [1], [0, 0, 1, 1], [], []>} : vector<64x16xbf16>, vector<16x8xbf16>, vector<64x8xf32> -> vector<64x8xf32>
    %14 = arith.addf %7, %13 : vector<64x8xf32>
    %c0_14 = arith.constant 0 : index
    %c1_15 = arith.constant 1 : index
    %c0_16 = arith.constant 0 : index
    %c0_17 = arith.constant 0 : index
    %15 = vector.load %arg1[%c0_14, %c1_15, %c0_16, %c0_17] : memref<1x9x9x16xbf16, #tpu.memory_space<vmem>>, vector<1x8x8x16xbf16>
    %16 = vector.shape_cast %15 : vector<1x8x8x16xbf16> to vector<8x8x16xbf16>
    %17 = vector.shape_cast %16 : vector<8x8x16xbf16> to vector<64x16xbf16>
    %c2 = arith.constant 2 : index
    %c0_18 = arith.constant 0 : index
    %c0_19 = arith.constant 0 : index
    %18 = vector.load %arg2[%c2, %c0_18, %c0_19] : memref<4x16x8xbf16, #tpu.memory_space<vmem>>, vector<1x16x8xbf16>
    %19 = vector.shape_cast %18 : vector<1x16x8xbf16> to vector<16x8xbf16>
    %cst_20 = arith.constant dense<0.000000e+00> : vector<64x8xf32>
    %20 = tpu.matmul %17, %19, %cst_20 {dimension_numbers = #tpu.dot_dimension_numbers<[1], [0], [0], [1], [0, 0, 1, 1], [], []>} : vector<64x16xbf16>, vector<16x8xbf16>, vector<64x8xf32> -> vector<64x8xf32>
    %21 = arith.addf %14, %20 : vector<64x8xf32>
    %c0_21 = arith.constant 0 : index
    %c1_22 = arith.constant 1 : index
    %c1_23 = arith.constant 1 : index
    %c0_24 = arith.constant 0 : index
    %22 = vector.load %arg1[%c0_21, %c1_22, %c1_23, %c0_24] : memref<1x9x9x16xbf16, #tpu.memory_space<vmem>>, vector<1x8x8x16xbf16>
    %23 = vector.shape_cast %22 : vector<1x8x8x16xbf16> to vector<8x8x16xbf16>
    %24 = vector.shape_cast %23 : vector<8x8x16xbf16> to vector<64x16xbf16>
    %c3 = arith.constant 3 : index
    %c0_25 = arith.constant 0 : index
    %c0_26 = arith.constant 0 : index
    %25 = vector.load %arg2[%c3, %c0_25, %c0_26] : memref<4x16x8xbf16, #tpu.memory_space<vmem>>, vector<1x16x8xbf16>
    %26 = vector.shape_cast %25 : vector<1x16x8xbf16> to vector<16x8xbf16>
    %cst_27 = arith.constant dense<0.000000e+00> : vector<64x8xf32>
    %27 = tpu.matmul %24, %26, %cst_27 {dimension_numbers = #tpu.dot_dimension_numbers<[1], [0], [0], [1], [0, 0, 1, 1], [], []>} : vector<64x16xbf16>, vector<16x8xbf16>, vector<64x8xf32> -> vector<64x8xf32>
    %28 = arith.addf %21, %27 : vector<64x8xf32>
    %cst_28 = arith.constant dense<0.000000e+00> : vector<8xf32>
    %29 = vector.multi_reduction <add>, %28, %cst_28 [0] : vector<64x8xf32> to vector<8xf32>
    %30 = vector.shape_cast %29 : vector<8xf32> to vector<1x8xf32>
    %cst_29 = arith.constant 1.562500e-02 : f32
    %31 = vector.broadcast %cst_29 : f32 to vector<1x8xf32>
    %32 = arith.mulf %30, %31 : vector<1x8xf32>
    %33 = arith.mulf %28, %28 : vector<64x8xf32>
    %cst_30 = arith.constant dense<0.000000e+00> : vector<8xf32>
    %34 = vector.multi_reduction <add>, %33, %cst_30 [0] : vector<64x8xf32> to vector<8xf32>
    %35 = vector.shape_cast %34 : vector<8xf32> to vector<1x8xf32>
    %cst_31 = arith.constant 1.562500e-02 : f32
    %36 = vector.broadcast %cst_31 : f32 to vector<1x8xf32>
    %37 = arith.mulf %35, %36 : vector<1x8xf32>
    %38 = arith.mulf %32, %32 : vector<1x8xf32>
    %39 = arith.subf %37, %38 : vector<1x8xf32>
    %40 = vector.broadcast %32 : vector<1x8xf32> to vector<64x8xf32>
    %41 = arith.subf %28, %40 : vector<64x8xf32>
    %cst_32 = arith.constant 9.99999974E-6 : f32
    %42 = vector.broadcast %cst_32 : f32 to vector<1x8xf32>
    %43 = arith.addf %39, %42 : vector<1x8xf32>
    %44 = math.rsqrt %43 : vector<1x8xf32>
    %45 = vector.broadcast %44 : vector<1x8xf32> to vector<64x8xf32>
    %46 = arith.mulf %41, %45 : vector<64x8xf32>
    %cst_33 = arith.constant 0.000000e+00 : f32
    %47 = vector.broadcast %cst_33 : f32 to vector<64x8xf32>
    %48 = arith.cmpf ogt, %46, %47 : vector<64x8xf32>
    %cst_34 = arith.constant 2.000000e-01 : f32
    %49 = vector.broadcast %cst_34 : f32 to vector<64x8xf32>
    %50 = arith.mulf %49, %46 : vector<64x8xf32>
    %51 = arith.select %48, %46, %50 : vector<64x8xi1>, vector<64x8xf32>
    %c0_35 = arith.constant 0 : index
    %c0_36 = arith.constant 0 : index
    %c0_37 = arith.constant 0 : index
    %52 = vector.load %arg3[%c0_35, %c0_36, %c0_37] : memref<1x64x8xf32, #tpu.memory_space<vmem>>, vector<1x64x8xf32>
    %53 = vector.shape_cast %52 : vector<1x64x8xf32> to vector<64x8xf32>
    %54 = vector.shape_cast %51 : vector<64x8xf32> to vector<1x64x8xf32>
    tpu.vector_store %arg3[%c0_35, %c0_36, %c0_37], %54 {strides = array<i32>} : memref<1x64x8xf32, #tpu.memory_space<vmem>>, vector<1x64x8xf32>,
    return
  }
  func.func @transform_0(%arg0: i32) -> (i32, i32, i32, i32) {
    %c0_i32 = arith.constant 0 : i32
    %c0_i32_0 = arith.constant 0 : i32
    %c0_i32_1 = arith.constant 0 : i32
    %c0_i32_2 = arith.constant 0 : i32
    return %arg0, %c0_i32, %c0_i32_0, %c0_i32_1 : i32, i32, i32, i32
  }
  func.func @transform_1(%arg0: i32) -> (i32, i32, i32) {
    %c0_i32 = arith.constant 0 : i32
    %c0_i32_0 = arith.constant 0 : i32
    %c0_i32_1 = arith.constant 0 : i32
    %c0_i32_2 = arith.constant 0 : i32
    return %c0_i32, %c0_i32_0, %c0_i32_1 : i32, i32, i32
  }
  func.func @transform_2(%arg0: i32) -> (i32, i32, i32) {
    %c0_i32 = arith.constant 0 : i32
    %c0_i32_0 = arith.constant 0 : i32
    %c0_i32_1 = arith.constant 0 : i32
    return %arg0, %c0_i32, %c0_i32_0 : i32, i32, i32
  }
}

</mosaic_0001>

<llo_original>
// kernel: tpu_custom_call.1
$region0: #{tpu_custom_call.1}
  #allocation0 [shape = 'u32[]', space=smem, size = 0x4, offset = 0x4, fixed_abs, tag = 'smem constant byte address 0x4 - core index']
  #allocation1 [shape = 'u32[72,128]{1,0:T(1,128)}', space=vmem, size = 0x9000, scoped, tag = 'internal scratch']
  %s0 = inlined_call_operand.vmem [shape: bf16[2,9,9,16], index: 0, kind: input, shape index: {}]
  %s1 = inlined_call_operand.vmem [shape: bf16[4,16,8], index: 1, kind: input, shape index: {}]
  %s2 = inlined_call_operand.vmem [shape: f32[2,64,8], index: 2, kind: output, shape index: {}]
  %s3 = sld [smem:[#allocation0]]
  $region41: #{tpu_custom_call.1} parent=0
    _
  %s5 = ssub.s32 1, %s3
  %s6 = scalar_select 0, %s5, %s3
  loop: start=0, step=1, limit=4
  $region2: #{tpu_custom_call.1} parent=0 // loop_pre_header
    _
  $region3: #{tpu_custom_call.1} parent=0 // loop_header
    %s8 = sphi 0, %s12
    %p9 = scmp.ge.s32.totalorder %s8, 4
    %s18 = sphi 0, %s20
    %s21 = sphi 0, %s18
    %s22 = sphi 0, %s21
    %s38 = sphi 0, %s22
    %s42 = sphi 0, %s42
    %s44 = sphi 0, %s42
    %s45 = sphi 0, %s44
    %s59 = sphi 0, %s45
    %s65 = sphi 0, %s67
    %s68 = sphi 0, %s65
    %s69 = sphi 0, %s68
    %s85 = sphi 0, %s69
  $region4: #{tpu_custom_call.1} parent=0 // loop_header_branch
    %11 = sbr.rel (%p9) target = $region8
  $region5: #{tpu_custom_call.1} parent=0 // loop_body
    %s13 = ssub.s32 %s8, 1
    %s14 = ssub.s32 %s8, 2
    %s15 = sadd.s32 %s8, 1
    %s16 = ssub.s32 %s8, %s15
    %p17 = scmp.eq.s32.totalorder %s16, 0
    %s19 = sadd.s32 %s18, 1
    %s20 = scalar_select %p17, %s18, %s19
    %p23 = pneg %p17
    %p24 = scmp.eq.s32.totalorder %s8, 1
    %p25 = por %p23, %p24
    %p26 = scmp.ne.s32.totalorder %s18, %s21
    %p27 = scmp.eq.s32.totalorder %s8, 0
    %p28 = por %p26, %p27
    %p29 = scmp.ne.s32.totalorder %s18, %s21
    %p30 = scmp.eq.s32.totalorder %s13, 1
    %p31 = por %p29, %p30
    %p32 = scmp.ne.s32.totalorder %s21, %s22
    %p33 = scmp.eq.s32.totalorder %s13, 0
    %p34 = por %p32, %p33
    %p35 = scmp.ne.s32.totalorder %s21, %s22
    %p36 = scmp.eq.s32.totalorder %s14, 1
    %p37 = por %p35, %p36
    %p39 = scmp.ne.s32.totalorder %s22, %s38
    %p40 = scmp.eq.s32.totalorder %s14, 0
    %p41 = por %p39, %p40
    %s43 = sadd.s32 %s42, 1
    %p46 = scmp.eq.s32.totalorder %s8, 1
    %p47 = scmp.ne.s32.totalorder %s42, %s44
    %p48 = scmp.eq.s32.totalorder %s8, 0
    %p49 = por %p47, %p48
    %p50 = scmp.ne.s32.totalorder %s42, %s44
    %p51 = scmp.eq.s32.totalorder %s13, 1
    %p52 = por %p50, %p51
    %p53 = scmp.ne.s32.totalorder %s44, %s45
    %p54 = scmp.eq.s32.totalorder %s13, 0
    %p55 = por %p53, %p54
    %p56 = scmp.ne.s32.totalorder %s44, %s45
    %p57 = scmp.eq.s32.totalorder %s14, 1
    %p58 = por %p56, %p57
    %p60 = scmp.ne.s32.totalorder %s45, %s59
    %p61 = scmp.eq.s32.totalorder %s14, 0
    %p62 = por %p60, %p61
    %s63 = ssub.s32 %s8, %s15
    %p64 = scmp.eq.s32.totalorder %s63, 0
    %s66 = sadd.s32 %s65, 1
    %s67 = scalar_select %p64, %s65, %s66
    %p70 = pneg %p64
    %p71 = scmp.eq.s32.totalorder %s8, 1
    %p72 = por %p70, %p71
    %p73 = scmp.ne.s32.totalorder %s65, %s68
    %p74 = scmp.eq.s32.totalorder %s8, 0
    %p75 = por %p73, %p74
    %p76 = scmp.ne.s32.totalorder %s65, %s68
    %p77 = scmp.eq.s32.totalorder %s13, 1
    %p78 = por %p76, %p77
    %p79 = scmp.ne.s32.totalorder %s68, %s69
    %p80 = scmp.eq.s32.totalorder %s13, 0
    %p81 = por %p79, %p80
    %p82 = scmp.ne.s32.totalorder %s68, %s69
    %p83 = scmp.eq.s32.totalorder %s14, 1
    %p84 = por %p82, %p83
    %p86 = scmp.ne.s32.totalorder %s69, %s85
    %p87 = scmp.eq.s32.totalorder %s14, 0
    %p88 = por %p86, %p87
    %p89 = scmp.le.s32.totalorder 1, %s8
    %p90 = scmp.lt.s32.totalorder %s8, 3
    %p91 = pnand %p89, %p90
    %p92 = pneg %p91
    // Predicated region
    $region9: #{tpu_custom_call.1} parent=5 // pred_check
      _
    $region10: #{tpu_custom_call.1} parent=5 // pred_check_branch
      %94 = sbr.rel (%p91) target = $region12
    $region11: #{tpu_custom_call.1} parent=5 // pred_region
      %s95 = ssub.s32 %s8, 1
      // Predicated region
      $region13: #{tpu_custom_call.1} parent=11 // pred_check
        %p96 = pneg %p55
      $region14: #{tpu_custom_call.1} parent=11 // pred_check_branch
        %98 = sbr.rel (%p96) target = $region16
      $region15: #{tpu_custom_call.1} parent=11 // pred_region
        _
      $region16: #{tpu_custom_call.1} parent=11 // pred_fallthru
        _
    $region12: #{tpu_custom_call.1} parent=5 // pred_fallthru
      _
    %p99 = scmp.lt.s32.totalorder %s8, 2
    // Predicated region
    $region17: #{tpu_custom_call.1} parent=5 // pred_check
      %p100 = pneg %p99
    $region18: #{tpu_custom_call.1} parent=5 // pred_check_branch
      %102 = sbr.rel (%p100) target = $region20
    $region19: #{tpu_custom_call.1} parent=5 // pred_region
      // Predicated region
      $region21: #{tpu_custom_call.1} parent=19 // pred_check
        %p103 = pneg %p28
      $region22: #{tpu_custom_call.1} parent=19 // pred_check_branch
        %105 = sbr.rel (%p103) target = $region24
      $region23: #{tpu_custom_call.1} parent=19 // pred_region
        %p106 = scmp.lt.s32.totalorder %s8, 1
        %s107 = scalar_select %p106, %s8, 1
        %s108 = smul.addr %s107, 18
        %s109 = smul.addr %s108, 4
        %s110 = scalar_lea.vmem %s0, %s109
      $region24: #{tpu_custom_call.1} parent=19 // pred_fallthru
        _
    $region20: #{tpu_custom_call.1} parent=5 // pred_fallthru
      _
    %p111 = scmp.le.s32.totalorder 1, %s8
    %p112 = scmp.lt.s32.totalorder %s8, 3
    %p113 = pnand %p111, %p112
    %p114 = pneg %p113
    // Predicated region
    $region25: #{tpu_custom_call.1} parent=5 // pred_check
      _
    $region26: #{tpu_custom_call.1} parent=5 // pred_check_branch
      %116 = sbr.rel (%p113) target = $region28
    $region27: #{tpu_custom_call.1} parent=5 // pred_region
      %s117 = ssub.s32 %s8, 1
      %p118 = scmp.lt.s32.totalorder %s13, 1
      %s119 = scalar_select %p118, %s13, 1
      %s120 = smul.addr %s119, 18
      %s121 = smul.addr %s120, 4
      %s122 = scalar_lea.vmem %s0, %s121
      %p123 = pneg %p34
      %p124 = pneg %p31
      %p125 = pneg %p55
      %p126 = pneg %p52
      %p127 = pneg %p81
      %p128 = pneg %p78
      %p129 = scmp.lt.s32.totalorder %s13, 1
      %s130 = scalar_select %p129, %s13, 1
      %s131 = smul.addr %s130, 8
      %s132 = smul.addr %s131, 8
      %s133 = scalar_lea.vmem %s2, %s132
      %p134 = scmp.lt.s32.totalorder %s13, 1
      %s135 = scalar_select %p134, %s13, 1
      %s136 = smul.addr %s135, 18
      %s137 = smul.addr %s136, 4
      %s138 = scalar_lea.vmem %s0, %s137
      %p139 = scmp.lt.s32.totalorder %s13, 1
      %s140 = scalar_select %p139, %s13, 1
      %s141 = smul.addr %s140, 8
      %s142 = smul.addr %s141, 8
      %s143 = scalar_lea.vmem %s2, %s142
      %v145 = vld [vmem:[%s138] sm:$0xf]
      %v146 = vld [vmem:[%s138 + $0x8] sm:$0xf]
      %v147 = vld [vmem:[%s138 + $0x10] sm:$0xf]
      %v148 = vld [vmem:[%s138 + $0x18] sm:$0xf]
      %v149 = vld [vmem:[%s138 + $0x20] sm:$0xf]
      %v150 = vld [vmem:[%s138 + $0x28] sm:$0xf]
      %v151 = vld [vmem:[%s138 + $0x30] sm:$0xf]
      %v152 = vld [vmem:[%s138 + $0x38] sm:$0xf]
      %v153 = vld [vmem:[%s1] sm:$0xf]
      %v154 = vld [vmem:[%s1 + $0x4] sm:$0xf]
      %v155 = vld [vmem:[%s138 + $0x4] sm:$0x1]
      %v156 = vld [vmem:[%s138 + $0xc] sm:$0x1]
      %v157 = vld [vmem:[%s138 + $0x14] sm:$0x1]
      %v158 = vld [vmem:[%s138 + $0x1c] sm:$0x1]
      %v159 = vld [vmem:[%s138 + $0x24] sm:$0x1]
      %v160 = vld [vmem:[%s138 + $0x2c] sm:$0x1]
      %v161 = vld [vmem:[%s138 + $0x34] sm:$0x1]
      %v162 = vld [vmem:[%s138 + $0x3c] sm:$0x1]
      %vm163 = vsmask.f32 3328
      %vm164 = vsmask.f32 7440
      %vm165 = vmor %vm163, %vm164
      %v167 = vshrl.u32 %v145, 16
      %v169 = vrot.slane %v167, 4
      %v170 = vshll.u32 %v145, 16
      %v172 = vrot.slane %v170, 5
      %v173 = vor.u32 %v169, %v172
      %v174 = vrot.slane %v173, 4
      %v176 = vshll.u32 %v155, 16
      %v178 = vrot.slane %v176, 5
      %v179 = vsel %vm165, %v174, %v178
      %v181 = vshrl.u32 %v146, 16
      %v183 = vrot.slane %v181, 4
      %v184 = vshll.u32 %v146, 16
      %v186 = vrot.slane %v184, 5
      %v187 = vor.u32 %v183, %v186
      %v188 = vrot.slane %v187, 4
      %v190 = vshll.u32 %v156, 16
      %v192 = vrot.slane %v190, 5
      %v193 = vsel %vm165, %v188, %v192
      %v195 = vshrl.u32 %v147, 16
      %v197 = vrot.slane %v195, 4
      %v198 = vshll.u32 %v147, 16
      %v200 = vrot.slane %v198, 5
      %v201 = vor.u32 %v197, %v200
      %v202 = vrot.slane %v201, 4
      %v204 = vshll.u32 %v157, 16
      %v206 = vrot.slane %v204, 5
      %v207 = vsel %vm165, %v202, %v206
      %v209 = vshrl.u32 %v148, 16
      %v211 = vrot.slane %v209, 4
      %v212 = vshll.u32 %v148, 16
      %v214 = vrot.slane %v212, 5
      %v215 = vor.u32 %v211, %v214
      %v216 = vrot.slane %v215, 4
      %v218 = vshll.u32 %v158, 16
      %v220 = vrot.slane %v218, 5
      %v221 = vsel %vm165, %v216, %v220
      %v223 = vshrl.u32 %v149, 16
      %v225 = vrot.slane %v223, 4
      %v226 = vshll.u32 %v149, 16
      %v228 = vrot.slane %v226, 5
      %v229 = vor.u32 %v225, %v228
      %v230 = vrot.slane %v229, 4
      %v232 = vshll.u32 %v159, 16
      %v234 = vrot.slane %v232, 5
      %v235 = vsel %vm165, %v230, %v234
      %v237 = vshrl.u32 %v150, 16
      %v239 = vrot.slane %v237, 4
      %v240 = vshll.u32 %v150, 16
      %v242 = vrot.slane %v240, 5
      %v243 = vor.u32 %v239, %v242
      %v244 = vrot.slane %v243, 4
      %v246 = vshll.u32 %v160, 16
      %v248 = vrot.slane %v246, 5
      %v249 = vsel %vm165, %v244, %v248
      %v251 = vshrl.u32 %v151, 16
      %v253 = vrot.slane %v251, 4
      %v254 = vshll.u32 %v151, 16
      %v256 = vrot.slane %v254, 5
      %v257 = vor.u32 %v253, %v256
      %v258 = vrot.slane %v257, 4
      %v260 = vshll.u32 %v161, 16
      %v262 = vrot.slane %v260, 5
      %v263 = vsel %vm165, %v258, %v262
      %v265 = vshrl.u32 %v152, 16
      %v267 = vrot.slane %v265, 4
      %v268 = vshll.u32 %v152, 16
      %v270 = vrot.slane %v268, 5
      %v271 = vor.u32 %v267, %v270
      %v272 = vrot.slane %v271, 4
      %v274 = vshll.u32 %v162, 16
      %v276 = vrot.slane %v274, 5
      %v277 = vsel %vm165, %v272, %v276
      %s278 = scalar_lea.vmem %s1, 8
      %v279 = vld [vmem:[%s278] sm:$0xf]
      %v280 = vld [vmem:[%s278 + $0x4] sm:$0xf]
      %v281 = vunpack.c.l.b16 %v179
      %v282 = vunpack.c.l.b16 %v193
      %v283 = vunpack.c.l.b16 %v207
      %v284 = vunpack.c.l.b16 %v221
      %v285 = vunpack.c.l.b16 %v235
      %v286 = vunpack.c.l.b16 %v249
      %v287 = vunpack.c.l.b16 %v263
      %v288 = vunpack.c.l.b16 %v277
      %v289 = vpack.c.b16 %v282, %v281
      %v290 = vpack.c.b16 %v284, %v283
      %v291 = vpack.c.b16 %v286, %v285
      %v292 = vpack.c.b16 %v288, %v287
      %v295 = vunpack.c.l.b16 %v279
      %v296 = vunpack.c.l.b16 %v280
      %v297 = vpack.c.b16 %v296, %v295
      %vm299 = vcmask 130048
      %v301 = vsel %vm299, %v289, 0
      %v304 = vsel %vm299, %v290, 0
      %v307 = vsel %vm299, %v291, 0
      %v310 = vsel %vm299, %v292, 0
      %312 = vmatpush.bf16.msra.mxu0 0
      %313 = vmatpush.bf16.msra.mxu0 0
      %314 = vmatpush.bf16.msra.mxu0 0
      %315 = vmatpush.bf16.msra.mxu0 0
      %316 = vmatpush.bf16.msra.mxu0 0
      %317 = vmatpush.bf16.msra.mxu0 0
      %318 = vmatpush.bf16.msra.mxu0 0
      %319 = vmatpush.bf16.msra.mxu0 %v297
      %320 = vmatmul.bf16.gmra.mxu0 %v301
      %v321 = vpop.f32.mrf.mxu0
      %v322 = vadd.f32 0.0, %v321
      %v323 = vpop.f32.mrf.mxu0
      %v324 = vadd.f32 0.0, %v323
      %325 = vmatmul.bf16.gmra.mxu0 %v304
      %v326 = vpop.f32.mrf.mxu0
      %v327 = vadd.f32 0.0, %v326
      %v328 = vpop.f32.mrf.mxu0
      %v329 = vadd.f32 0.0, %v328
      %330 = vmatmul.bf16.gmra.mxu0 %v307
      %v331 = vpop.f32.mrf.mxu0
      %v332 = vadd.f32 0.0, %v331
      %v333 = vpop.f32.mrf.mxu0
      %v334 = vadd.f32 0.0, %v333
      %335 = vmatmul.bf16.gmra.mxu0 %v310
      %v336 = vpop.f32.mrf.mxu0
      %v337 = vadd.f32 0.0, %v336
      %v338 = vpop.f32.mrf.mxu0
      %v339 = vadd.f32 0.0, %v338
      %340 = vdwg.mxu0
      %v349 = vunpack.c.l.b16 %v145
      %v350 = vunpack.c.l.b16 %v146
      %v351 = vunpack.c.l.b16 %v147
      %v352 = vunpack.c.l.b16 %v148
      %v353 = vunpack.c.l.b16 %v149
      %v354 = vunpack.c.l.b16 %v150
      %v355 = vunpack.c.l.b16 %v151
      %v356 = vunpack.c.l.b16 %v152
      %v357 = vpack.c.b16 %v350, %v349
      %v358 = vpack.c.b16 %v352, %v351
      %v359 = vpack.c.b16 %v354, %v353
      %v360 = vpack.c.b16 %v356, %v355
      %v363 = vunpack.c.l.b16 %v153
      %v364 = vunpack.c.l.b16 %v154
      %v365 = vpack.c.b16 %v364, %v363
      %v368 = vsel %vm299, %v357, 0
      %v371 = vsel %vm299, %v358, 0
      %v374 = vsel %vm299, %v359, 0
      %v377 = vsel %vm299, %v360, 0
      %379 = vmatpush.bf16.msra.mxu0 0
      %380 = vmatpush.bf16.msra.mxu0 0
      %381 = vmatpush.bf16.msra.mxu0 0
      %382 = vmatpush.bf16.msra.mxu0 0
      %383 = vmatpush.bf16.msra.mxu0 0
      %384 = vmatpush.bf16.msra.mxu0 0
      %385 = vmatpush.bf16.msra.mxu0 0
      %386 = vmatpush.bf16.msra.mxu0 %v365
      %387 = vmatmul.bf16.gmra.mxu0 %v368
      %v388 = vpop.f32.mrf.mxu0
      %v389 = vadd.f32 %v322, %v388
      %v390 = vpop.f32.mrf.mxu0
      %v391 = vadd.f32 %v324, %v390
      %392 = vmatmul.bf16.gmra.mxu0 %v371
      %v393 = vpop.f32.mrf.mxu0
      %v394 = vadd.f32 %v327, %v393
      %v395 = vpop.f32.mrf.mxu0
      %v396 = vadd.f32 %v329, %v395
      %397 = vmatmul.bf16.gmra.mxu0 %v374
      %v398 = vpop.f32.mrf.mxu0
      %v399 = vadd.f32 %v332, %v398
      %v400 = vpop.f32.mrf.mxu0
      %v401 = vadd.f32 %v334, %v400
      %402 = vmatmul.bf16.gmra.mxu0 %v377
      %v403 = vpop.f32.mrf.mxu0
      %v404 = vadd.f32 %v337, %v403
      %v405 = vpop.f32.mrf.mxu0
      %v406 = vadd.f32 %v339, %v405
      %407 = vdwg.mxu0
      %s408 = scalar_lea.vmem %s138, 8
      %v409 = vld [vmem:[%s408] sm:$0xf]
      %v410 = vld [vmem:[%s408 + $0x8] sm:$0xf]
      %v411 = vld [vmem:[%s408 + $0x10] sm:$0xf]
      %v412 = vld [vmem:[%s408 + $0x18] sm:$0xf]
      %v413 = vld [vmem:[%s408 + $0x20] sm:$0xf]
      %v414 = vld [vmem:[%s408 + $0x28] sm:$0xf]
      %v415 = vld [vmem:[%s408 + $0x30] sm:$0xf]
      %v416 = vld [vmem:[%s408 + $0x38] sm:$0xf]
      %s417 = scalar_lea.vmem %s1, 16
      %v418 = vld [vmem:[%s417] sm:$0xf]
      %v419 = vld [vmem:[%s417 + $0x4] sm:$0xf]
      %v428 = vunpack.c.l.b16 %v409
      %v429 = vunpack.c.l.b16 %v410
      %v430 = vunpack.c.l.b16 %v411
      %v431 = vunpack.c.l.b16 %v412
      %v432 = vunpack.c.l.b16 %v413
      %v433 = vunpack.c.l.b16 %v414
      %v434 = vunpack.c.l.b16 %v415
      %v435 = vunpack.c.l.b16 %v416
      %v436 = vpack.c.b16 %v429, %v428
      %v437 = vpack.c.b16 %v431, %v430
      %v438 = vpack.c.b16 %v433, %v432
      %v439 = vpack.c.b16 %v435, %v434
      %v442 = vunpack.c.l.b16 %v418
      %v443 = vunpack.c.l.b16 %v419
      %v444 = vpack.c.b16 %v443, %v442
      %v447 = vsel %vm299, %v436, 0
      %v450 = vsel %vm299, %v437, 0
      %v453 = vsel %vm299, %v438, 0
      %v456 = vsel %vm299, %v439, 0
      %458 = vmatpush.bf16.msra.mxu0 0
      %459 = vmatpush.bf16.msra.mxu0 0
      %460 = vmatpush.bf16.msra.mxu0 0
      %461 = vmatpush.bf16.msra.mxu0 0
      %462 = vmatpush.bf16.msra.mxu0 0
      %463 = vmatpush.bf16.msra.mxu0 0
      %464 = vmatpush.bf16.msra.mxu0 0
      %465 = vmatpush.bf16.msra.mxu0 %v444
      %466 = vmatmul.bf16.gmra.mxu0 %v447
      %v467 = vpop.f32.mrf.mxu0
      %v468 = vadd.f32 0.0, %v467
      %v469 = vpop.f32.mrf.mxu0
      %v470 = vadd.f32 0.0, %v469
      %471 = vmatmul.bf16.gmra.mxu0 %v450
      %v472 = vpop.f32.mrf.mxu0
      %v473 = vadd.f32 0.0, %v472
      %v474 = vpop.f32.mrf.mxu0
      %v475 = vadd.f32 0.0, %v474
      %476 = vmatmul.bf16.gmra.mxu0 %v453
      %v477 = vpop.f32.mrf.mxu0
      %v478 = vadd.f32 0.0, %v477
      %v479 = vpop.f32.mrf.mxu0
      %v480 = vadd.f32 0.0, %v479
      %481 = vmatmul.bf16.gmra.mxu0 %v456
      %v482 = vpop.f32.mrf.mxu0
      %v483 = vadd.f32 0.0, %v482
      %v484 = vpop.f32.mrf.mxu0
      %v485 = vadd.f32 0.0, %v484
      %486 = vdwg.mxu0
      %v487 = vadd.f32 %v389, %v468
      %v488 = vadd.f32 %v391, %v470
      %v489 = vadd.f32 %v394, %v473
      %v490 = vadd.f32 %v396, %v475
      %v491 = vadd.f32 %v399, %v478
      %v492 = vadd.f32 %v401, %v480
      %v493 = vadd.f32 %v404, %v483
      %v494 = vadd.f32 %v406, %v485
      %v495 = vld [vmem:[%s408] sm:$0xf]
      %v496 = vld [vmem:[%s408 + $0x4] sm:$0x1]
      %v497 = vld [vmem:[%s408 + $0x8] sm:$0xf]
      %v498 = vld [vmem:[%s408 + $0xc] sm:$0x1]
      %v499 = vld [vmem:[%s408 + $0x10] sm:$0xf]
      %v500 = vld [vmem:[%s408 + $0x14] sm:$0x1]
      %v501 = vld [vmem:[%s408 + $0x18] sm:$0xf]
      %v502 = vld [vmem:[%s408 + $0x1c] sm:$0x1]
      %v503 = vld [vmem:[%s408 + $0x20] sm:$0xf]
      %v504 = vld [vmem:[%s408 + $0x24] sm:$0x1]
      %v505 = vld [vmem:[%s408 + $0x28] sm:$0xf]
      %v506 = vld [vmem:[%s408 + $0x2c] sm:$0x1]
      %v507 = vld [vmem:[%s408 + $0x30] sm:$0xf]
      %v508 = vld [vmem:[%s408 + $0x34] sm:$0x1]
      %v509 = vld [vmem:[%s408 + $0x38] sm:$0xf]
      %v510 = vld [vmem:[%s408 + $0x3c] sm:$0x1]
      %v512 = vshrl.u32 %v495, 16
      %v514 = vrot.slane %v512, 4
      %v515 = vshll.u32 %v495, 16
      %v517 = vrot.slane %v515, 5
      %v518 = vor.u32 %v514, %v517
      %v519 = vrot.slane %v518, 4
      %v521 = vshll.u32 %v496, 16
      %v523 = vrot.slane %v521, 5
      %v524 = vsel %vm165, %v519, %v523
      %v526 = vshrl.u32 %v497, 16
      %v528 = vrot.slane %v526, 4
      %v529 = vshll.u32 %v497, 16
      %v531 = vrot.slane %v529, 5
      %v532 = vor.u32 %v528, %v531
      %v533 = vrot.slane %v532, 4
      %v535 = vshll.u32 %v498, 16
      %v537 = vrot.slane %v535, 5
      %v538 = vsel %vm165, %v533, %v537
      %v540 = vshrl.u32 %v499, 16
      %v542 = vrot.slane %v540, 4
      %v543 = vshll.u32 %v499, 16
      %v545 = vrot.slane %v543, 5
      %v546 = vor.u32 %v542, %v545
      %v547 = vrot.slane %v546, 4
      %v549 = vshll.u32 %v500, 16
      %v551 = vrot.slane %v549, 5
      %v552 = vsel %vm165, %v547, %v551
      %v554 = vshrl.u32 %v501, 16
      %v556 = vrot.slane %v554, 4
      %v557 = vshll.u32 %v501, 16
      %v559 = vrot.slane %v557, 5
      %v560 = vor.u32 %v556, %v559
      %v561 = vrot.slane %v560, 4
      %v563 = vshll.u32 %v502, 16
      %v565 = vrot.slane %v563, 5
      %v566 = vsel %vm165, %v561, %v565
      %v568 = vshrl.u32 %v503, 16
      %v570 = vrot.slane %v568, 4
      %v571 = vshll.u32 %v503, 16
      %v573 = vrot.slane %v571, 5
      %v574 = vor.u32 %v570, %v573
      %v575 = vrot.slane %v574, 4
      %v577 = vshll.u32 %v504, 16
      %v579 = vrot.slane %v577, 5
      %v580 = vsel %vm165, %v575, %v579
      %v582 = vshrl.u32 %v505, 16
      %v584 = vrot.slane %v582, 4
      %v585 = vshll.u32 %v505, 16
      %v587 = vrot.slane %v585, 5
      %v588 = vor.u32 %v584, %v587
      %v589 = vrot.slane %v588, 4
      %v591 = vshll.u32 %v506, 16
      %v593 = vrot.slane %v591, 5
      %v594 = vsel %vm165, %v589, %v593
      %v596 = vshrl.u32 %v507, 16
      %v598 = vrot.slane %v596, 4
      %v599 = vshll.u32 %v507, 16
      %v601 = vrot.slane %v599, 5
      %v602 = vor.u32 %v598, %v601
      %v603 = vrot.slane %v602, 4
      %v605 = vshll.u32 %v508, 16
      %v607 = vrot.slane %v605, 5
      %v608 = vsel %vm165, %v603, %v607
      %v610 = vshrl.u32 %v509, 16
      %v612 = vrot.slane %v610, 4
      %v613 = vshll.u32 %v509, 16
      %v615 = vrot.slane %v613, 5
      %v616 = vor.u32 %v612, %v615
      %v617 = vrot.slane %v616, 4
      %v619 = vshll.u32 %v510, 16
      %v621 = vrot.slane %v619, 5
      %v622 = vsel %vm165, %v617, %v621
      %s623 = scalar_lea.vmem %s1, 24
      %v624 = vld [vmem:[%s623] sm:$0xf]
      %v625 = vld [vmem:[%s623 + $0x4] sm:$0xf]
      %v626 = vunpack.c.l.b16 %v524
      %v627 = vunpack.c.l.b16 %v538
      %v628 = vunpack.c.l.b16 %v552
      %v629 = vunpack.c.l.b16 %v566
      %v630 = vunpack.c.l.b16 %v580
      %v631 = vunpack.c.l.b16 %v594
      %v632 = vunpack.c.l.b16 %v608
      %v633 = vunpack.c.l.b16 %v622
      %v634 = vpack.c.b16 %v627, %v626
      %v635 = vpack.c.b16 %v629, %v628
      %v636 = vpack.c.b16 %v631, %v630
      %v637 = vpack.c.b16 %v633, %v632
      %v640 = vunpack.c.l.b16 %v624
      %v641 = vunpack.c.l.b16 %v625
      %v642 = vpack.c.b16 %v641, %v640
      %v645 = vsel %vm299, %v634, 0
      %v648 = vsel %vm299, %v635, 0
      %v651 = vsel %vm299, %v636, 0
      %v654 = vsel %vm299, %v637, 0
      %656 = vmatpush.bf16.msra.mxu0 0
      %657 = vmatpush.bf16.msra.mxu0 0
      %658 = vmatpush.bf16.msra.mxu0 0
      %659 = vmatpush.bf16.msra.mxu0 0
      %660 = vmatpush.bf16.msra.mxu0 0
      %661 = vmatpush.bf16.msra.mxu0 0
      %662 = vmatpush.bf16.msra.mxu0 0
      %663 = vmatpush.bf16.msra.mxu0 %v642
      %664 = vmatmul.bf16.gmra.mxu0 %v645
      %v665 = vpop.f32.mrf.mxu0
      %v666 = vadd.f32 0.0, %v665
      %v667 = vpop.f32.mrf.mxu0
      %v668 = vadd.f32 0.0, %v667
      %669 = vmatmul.bf16.gmra.mxu0 %v648
      %v670 = vpop.f32.mrf.mxu0
      %v671 = vadd.f32 0.0, %v670
      %v672 = vpop.f32.mrf.mxu0
      %v673 = vadd.f32 0.0, %v672
      %674 = vmatmul.bf16.gmra.mxu0 %v651
      %v675 = vpop.f32.mrf.mxu0
      %v676 = vadd.f32 0.0, %v675
      %v677 = vpop.f32.mrf.mxu0
      %v678 = vadd.f32 0.0, %v677
      %679 = vmatmul.bf16.gmra.mxu0 %v654
      %v680 = vpop.f32.mrf.mxu0
      %v681 = vadd.f32 0.0, %v680
      %v682 = vpop.f32.mrf.mxu0
      %v683 = vadd.f32 0.0, %v682
      %684 = vdwg.mxu0
      %v685 = vadd.f32 %v487, %v666
      %v686 = vadd.f32 %v488, %v668
      %v687 = vadd.f32 %v489, %v671
      %v688 = vadd.f32 %v490, %v673
      %v689 = vadd.f32 %v491, %v676
      %v690 = vadd.f32 %v492, %v678
      %v691 = vadd.f32 %v493, %v681
      %v692 = vadd.f32 %v494, %v683
      %vm693 = vcmask 64512
      %v694 = vsel %vm693, %v685, 0.0
      %v695 = vsel %vm693, %v686, 0.0
      %v696 = vadd.f32 %v694, %v695
      %v697 = vsel %vm693, %v687, 0.0
      %v698 = vadd.f32 %v696, %v697
      %v699 = vsel %vm693, %v688, 0.0
      %v700 = vadd.f32 %v698, %v699
      %v701 = vsel %vm693, %v689, 0.0
      %v702 = vadd.f32 %v700, %v701
      %v703 = vsel %vm693, %v690, 0.0
      %v704 = vadd.f32 %v702, %v703
      %v705 = vsel %vm693, %v691, 0.0
      %v706 = vadd.f32 %v704, %v705
      %v707 = vsel %vm693, %v692, 0.0
      %v708 = vadd.f32 %v706, %v707
      %v709 = vrot.slane %v708, 4
      %v710 = vadd.f32 %v708, %v709
      %v711 = vrot.slane %v710, 2
      %v712 = vadd.f32 %v710, %v711
      %v713 = vrot.slane %v712, 1
      %v714 = vadd.f32 %v712, %v713
      %v715 = vmul.f32 %v714, 0.015625
      %v716 = vmul.f32 %v685, %v685
      %v717 = vmul.f32 %v686, %v686
      %v718 = vmul.f32 %v687, %v687
      %v719 = vmul.f32 %v688, %v688
      %v720 = vmul.f32 %v689, %v689
      %v721 = vmul.f32 %v690, %v690
      %v722 = vmul.f32 %v691, %v691
      %v723 = vmul.f32 %v692, %v692
      %v724 = vsel %vm693, %v716, 0.0
      %v725 = vsel %vm693, %v717, 0.0
      %v726 = vadd.f32 %v724, %v725
      %v727 = vsel %vm693, %v718, 0.0
      %v728 = vadd.f32 %v726, %v727
      %v729 = vsel %vm693, %v719, 0.0
      %v730 = vadd.f32 %v728, %v729
      %v731 = vsel %vm693, %v720, 0.0
      %v732 = vadd.f32 %v730, %v731
      %v733 = vsel %vm693, %v721, 0.0
      %v734 = vadd.f32 %v732, %v733
      %v735 = vsel %vm693, %v722, 0.0
      %v736 = vadd.f32 %v734, %v735
      %v737 = vsel %vm693, %v723, 0.0
      %v738 = vadd.f32 %v736, %v737
      %v739 = vrot.slane %v738, 4
      %v740 = vadd.f32 %v738, %v739
      %v741 = vrot.slane %v740, 2
      %v742 = vadd.f32 %v740, %v741
      %v743 = vrot.slane %v742, 1
      %v744 = vadd.f32 %v742, %v743
      %v745 = vmul.f32 %v744, 0.015625
      %v746 = vmul.f32 %v715, %v715
      %v747 = vsub.f32 %v745, %v746
      %v748 = vsub.f32 %v685, %v715
      %v749 = vsub.f32 %v686, %v715
      %v750 = vsub.f32 %v687, %v715
      %v751 = vsub.f32 %v688, %v715
      %v752 = vsub.f32 %v689, %v715
      %v753 = vsub.f32 %v690, %v715
      %v754 = vsub.f32 %v691, %v715
      %v755 = vsub.f32 %v692, %v715
      %v756 = vadd.f32 %v747, 1e-05
      %v757 = vrsqrt.pop %v756
      %v758 = vmul.f32 %v757, %v756
      %v759 = vmul.f32 %v758, %v757
      %v760 = vmul.f32 0.5, %v759
      %v761 = vsub.f32 1.5, %v760
      %v762 = vmul.f32 %v757, %v761
      %vm763 = vweird.f32 %v756
      %vm764 = vweird.f32 %v757
      %vm765 = vmor %vm763, %vm764
      %v766 = vsel %vm765, %v757, %v762
      %v767 = vmul.f32 %v748, %v766
      %v768 = vmul.f32 %v749, %v766
      %v769 = vmul.f32 %v750, %v766
      %v770 = vmul.f32 %v751, %v766
      %v771 = vmul.f32 %v752, %v766
      %v772 = vmul.f32 %v753, %v766
      %v773 = vmul.f32 %v754, %v766
      %v774 = vmul.f32 %v755, %v766
      %vm775 = vcmp.gt.f32.partialorder %v767, 0.0
      %vm776 = vcmp.gt.f32.partialorder %v768, 0.0
      %vm777 = vcmp.gt.f32.partialorder %v769, 0.0
      %vm778 = vcmp.gt.f32.partialorder %v770, 0.0
      %vm779 = vcmp.gt.f32.partialorder %v771, 0.0
      %vm780 = vcmp.gt.f32.partialorder %v772, 0.0
      %vm781 = vcmp.gt.f32.partialorder %v773, 0.0
      %vm782 = vcmp.gt.f32.partialorder %v774, 0.0
      %v783 = vmul.f32 %v767, 0.2
      %v784 = vmul.f32 %v768, 0.2
      %v785 = vmul.f32 %v769, 0.2
      %v786 = vmul.f32 %v770, 0.2
      %v787 = vmul.f32 %v771, 0.2
      %v788 = vmul.f32 %v772, 0.2
      %v789 = vmul.f32 %v773, 0.2
      %v790 = vmul.f32 %v774, 0.2
      %v791 = vsel %vm775, %v767, %v783
      %v792 = vsel %vm776, %v768, %v784
      %v793 = vsel %vm777, %v769, %v785
      %v794 = vsel %vm778, %v770, %v786
      %v795 = vsel %vm779, %v771, %v787
      %v796 = vsel %vm780, %v772, %v788
      %v797 = vsel %vm781, %v773, %v789
      %v798 = vsel %vm782, %v774, %v790
      %799 = vst.msk [vmem:[%s143] sm:$0xff] %vm693, %v791
      %800 = vst.msk [vmem:[%s143 + $0x8] sm:$0xff] %vm693, %v792
      %801 = vst.msk [vmem:[%s143 + $0x10] sm:$0xff] %vm693, %v793
      %802 = vst.msk [vmem:[%s143 + $0x18] sm:$0xff] %vm693, %v794
      %803 = vst.msk [vmem:[%s143 + $0x20] sm:$0xff] %vm693, %v795
      %804 = vst.msk [vmem:[%s143 + $0x28] sm:$0xff] %vm693, %v796
      %805 = vst.msk [vmem:[%s143 + $0x30] sm:$0xff] %vm693, %v797
      %806 = vst.msk [vmem:[%s143 + $0x38] sm:$0xff] %vm693, %v798
      %p807 = scmp.lt.s32.totalorder %s13, 1
      %s808 = scalar_select %p807, %s13, 1
      %s809 = smul.addr %s808, 8
      %s810 = smul.addr %s809, 8
      %s811 = scalar_lea.vmem %s2, %s810
      // Predicated region
      $region29: #{tpu_custom_call.1} parent=27 // pred_check
        %p812 = pneg %p78
      $region30: #{tpu_custom_call.1} parent=27 // pred_check_branch
        %814 = sbr.rel (%p812) target = $region32
      $region31: #{tpu_custom_call.1} parent=27 // pred_region
        _
      $region32: #{tpu_custom_call.1} parent=27 // pred_fallthru
        _
    $region28: #{tpu_custom_call.1} parent=5 // pred_fallthru
      _
    %p815 = scmp.le.s32.totalorder 2, %s8
    // Predicated region
    $region33: #{tpu_custom_call.1} parent=5 // pred_check
      %p816 = pneg %p815
    $region34: #{tpu_custom_call.1} parent=5 // pred_check_branch
      %818 = sbr.rel (%p816) target = $region36
    $region35: #{tpu_custom_call.1} parent=5 // pred_region
      %s819 = ssub.s32 %s8, 2
      // Predicated region
      $region37: #{tpu_custom_call.1} parent=35 // pred_check
        %p820 = pneg %p84
      $region38: #{tpu_custom_call.1} parent=35 // pred_check_branch
        %822 = sbr.rel (%p820) target = $region40
      $region39: #{tpu_custom_call.1} parent=35 // pred_region
        %p823 = scmp.lt.s32.totalorder %s14, 1
        %s824 = scalar_select %p823, %s14, 1
        %s825 = smul.addr %s824, 8
        %s826 = smul.addr %s825, 8
        %s827 = scalar_lea.vmem %s2, %s826
      $region40: #{tpu_custom_call.1} parent=35 // pred_fallthru
        _
    $region36: #{tpu_custom_call.1} parent=5 // pred_fallthru
      _
  $region6: #{tpu_custom_call.1} parent=0 // loop_footer
    %s12 = sadd.s32 1, %s8
  $region7: #{tpu_custom_call.1} parent=0 // loop_footer_branch
    %7 = sbr.rel target = $region3
  $region8: #{tpu_custom_call.1} parent=0 // loop_exit
    _

</llo_original>
